<compile_context>
chip_gen: v5e
topology: v5e:2x2
jax: 0.10.0
libtpu: 0.0.40
codegen_flags: <defaults>
</compile_context>

<pallas_src>
import functools

import numpy as np
import jax
import jax.numpy as jnp
from jax import lax
from jax.experimental import pallas as pl
from jax.experimental.pallas import tpu as pltpu


def _parallel(n):
    return pltpu.CompilerParams(dimension_semantics=("parallel",) * n)


_PARALLEL_1D = _parallel(1)


def _round_up(x, m):
    return pl.cdiv(x, m) * m


def _row_tiles(M, target=512):
    """Row-tile size for flattened (M, K) inputs.

    Largest tile <= `target` such that the 1-D grid has >= 2 steps (keeps both
    v7x TensorCores busy); full block for tiny M.
    TODO(synk): replace the pad/slice fallback with an in-kernel tail mask."""
    if M <= 8:
        return M, M, 1
    bm = min(target, _round_up(pl.cdiv(M, 2), 8))
    Mp = _round_up(M, bm)
    return bm, Mp, Mp // bm


# ------------------------- shared in-kernel helpers -------------------------

def _layernorm(x, g, b):
    mu = jnp.mean(x, axis=-1, keepdims=True)
    var = jnp.mean((x - mu) ** 2, axis=-1, keepdims=True)
    return (x - mu) * lax.rsqrt(var + 1e-5) * g + b


def _attn_core(xn, wqkv, bqkv, wo, bo, n_head):
    """Multi-head self-attention on an (Rb, S, D) f32 tile.

    Heads are folded into the leading batch axis so the score / PV contractions
    run as single batched einsums (no per-head Python loop, no lane concat);
    the 1/sqrt(dh) scale is folded into q and the softmax denominator uses the
    EUP approx reciprocal.  All MXU operands are bf16 with f32 accumulation."""
    Rb, S, D = xn.shape
    dh = D // n_head
    qkv = jnp.dot(xn.reshape(Rb * S, D).astype(jnp.bfloat16), wqkv,
                  preferred_element_type=jnp.float32) + bqkv
    qkv = qkv.reshape(Rb, S, 3 * n_head, dh)

    def split_heads(t):                                # (Rb, S, H, dh) -> (Rb*H, S, dh)
        return jnp.swapaxes(t, 1, 2).reshape(Rb * n_head, S, dh)

    scale = 1.0 / float(np.sqrt(dh))
    q = split_heads(qkv[:, :, :n_head] * scale).astype(jnp.bfloat16)
    k = split_heads(qkv[:, :, n_head:2 * n_head]).astype(jnp.bfloat16)
    v = split_heads(qkv[:, :, 2 * n_head:]).astype(jnp.bfloat16)
    s = jnp.einsum('bqd,bkd->bqk', q, k, preferred_element_type=jnp.float32)
    s = s - jnp.max(s, axis=-1, keepdims=True)
    p = jnp.exp(s)
    p = p * pl.reciprocal(jnp.sum(p, axis=-1, keepdims=True), approx=True)
    o = jnp.einsum('bqk,bkd->bqd', p.astype(jnp.bfloat16), v,
                   preferred_element_type=jnp.float32)             # (Rb*H, S, dh)
    o = jnp.swapaxes(o.reshape(Rb, n_head, S, dh), 1, 2).reshape(Rb * S, D)
    out = jnp.dot(o.astype(jnp.bfloat16), wo,
                  preferred_element_type=jnp.float32) + bo
    return out.reshape(Rb, S, D)


# ----------------------------- Pallas kernels ------------------------------

def _linear_kernel(x_ref, w_ref, b_ref, o_ref, *, act):
    y = jnp.dot(x_ref[...].astype(jnp.bfloat16), w_ref[...],
                preferred_element_type=jnp.float32) + b_ref[...]
    if act == "relu":
        y = jnp.maximum(y, 0.0)
    elif act == "sigmoid":
        y = jax.nn.sigmoid(y)
    o_ref[...] = y.astype(o_ref.dtype)


def linear(x, w, b, act=None, out_dtype=jnp.float32, target=512):
    """y = act(x @ w + b); bf16 MXU inputs, f32 accumulation."""
    K = x.shape[-1]
    N = w.shape[-1]
    lead = x.shape[:-1]
    M = int(np.prod(lead)) if lead else 1
    x2 = x.reshape(M, K)
    bm, Mp, grid = _row_tiles(M, target)
    if Mp != M:
        x2 = jnp.pad(x2, ((0, Mp - M), (0, 0)))
    out = pl.pallas_call(
        functools.partial(_linear_kernel, act=act),
        out_shape=jax.ShapeDtypeStruct((Mp, N), out_dtype),
        grid=(grid,),
        in_specs=[pl.BlockSpec((bm, K), lambda i: (i, 0)),
                  pl.BlockSpec((K, N), lambda i: (0, 0)),
                  pl.BlockSpec((1, N), lambda i: (0, 0))],
        out_specs=pl.BlockSpec((bm, N), lambda i: (i, 0)),
        compiler_params=_PARALLEL_1D,
    )(x2, w, b.reshape(1, N))
    if Mp != M:
        out = out[:M]
    return out.reshape(*lead, N)


def _linear_res_kernel(x_ref, w_ref, b_ref, r_ref, o_ref):
    y = jnp.dot(x_ref[...].astype(jnp.bfloat16), w_ref[...],
                preferred_element_type=jnp.float32) + b_ref[...]
    o_ref[...] = (r_ref[...].astype(jnp.float32) + y).astype(o_ref.dtype)


def linear_residual(x, w, b, res, out_dtype=jnp.float32, target=512):
    """out = res + x @ w + b (residual add fused into the matmul epilogue)."""
    K = x.shape[-1]
    N = w.shape[-1]
    lead = x.shape[:-1]
    M = int(np.prod(lead)) if lead else 1
    x2 = x.reshape(M, K)
    r2 = res.reshape(M, N)
    bm, Mp, grid = _row_tiles(M, target)
    if Mp != M:
        x2 = jnp.pad(x2, ((0, Mp - M), (0, 0)))
        r2 = jnp.pad(r2, ((0, Mp - M), (0, 0)))
    out = pl.pallas_call(
        _linear_res_kernel,
        out_shape=jax.ShapeDtypeStruct((Mp, N), out_dtype),
        grid=(grid,),
        in_specs=[pl.BlockSpec((bm, K), lambda i: (i, 0)),
                  pl.BlockSpec((K, N), lambda i: (0, 0)),
                  pl.BlockSpec((1, N), lambda i: (0, 0)),
                  pl.BlockSpec((bm, N), lambda i: (i, 0))],
        out_specs=pl.BlockSpec((bm, N), lambda i: (i, 0)),
        compiler_params=_PARALLEL_1D,
    )(x2, w, b.reshape(1, N), r2)
    if Mp != M:
        out = out[:M]
    return out.reshape(*lead, N)


def _ln_ffn_kernel(x_ref, g_ref, b_ref, w1_ref, b1_ref, w2_ref, b2_ref, o_ref):
    x = x_ref[...].astype(jnp.float32)
    xn = _layernorm(x, g_ref[...], b_ref[...])
    h = jnp.dot(xn.astype(jnp.bfloat16), w1_ref[...],
                preferred_element_type=jnp.float32) + b1_ref[...]
    h = jnp.maximum(h, 0.0)
    y = jnp.dot(h.astype(jnp.bfloat16), w2_ref[...],
                preferred_element_type=jnp.float32) + b2_ref[...]
    o_ref[...] = (x + y).astype(o_ref.dtype)


def ln_ffn_residual(x, ln, ff1, ff2, out_dtype=jnp.bfloat16, target=512):
    """out = x + FF2(relu(FF1(LN(x)))) fused in one kernel; bf16 store."""
    D = x.shape[-1]
    lead = x.shape[:-1]
    M = int(np.prod(lead))
    g, b = ln
    w1, b1 = ff1
    w2, b2 = ff2
    H = w1.shape[-1]
    x2 = x.reshape(M, D)
    bm, Mp, grid = _row_tiles(M, target)
    if Mp != M:
        x2 = jnp.pad(x2, ((0, Mp - M), (0, 0)))
    out = pl.pallas_call(
        _ln_ffn_kernel,
        out_shape=jax.ShapeDtypeStruct((Mp, D), out_dtype),
        grid=(grid,),
        in_specs=[pl.BlockSpec((bm, D), lambda i: (i, 0)),
                  pl.BlockSpec((1, D), lambda i: (0, 0)),
                  pl.BlockSpec((1, D), lambda i: (0, 0)),
                  pl.BlockSpec((D, H), lambda i: (0, 0)),
                  pl.BlockSpec((1, H), lambda i: (0, 0)),
                  pl.BlockSpec((H, D), lambda i: (0, 0)),
                  pl.BlockSpec((1, D), lambda i: (0, 0))],
        out_specs=pl.BlockSpec((bm, D), lambda i: (i, 0)),
        compiler_params=_PARALLEL_1D,
    )(x2, g.reshape(1, D), b.reshape(1, D), w1, b1.reshape(1, H), w2, b2.reshape(1, D))
    if Mp != M:
        out = out[:M]
    return out.reshape(*lead, D)


def _ln_mhsa_kernel(x_ref, g_ref, b_ref, wqkv_ref, bqkv_ref, wo_ref, bo_ref, o_ref,
                    *, n_head):
    x = x_ref[...].astype(jnp.float32)                  # (RB, S, D)
    xn = _layernorm(x, g_ref[...], b_ref[...])
    att = _attn_core(xn, wqkv_ref[...], bqkv_ref[...], wo_ref[...], bo_ref[...], n_head)
    o_ref[...] = (x + att).astype(o_ref.dtype)


def ln_mhsa_residual(x, ln, attn, n_head, rb_target=8, out_dtype=jnp.bfloat16):
    """out = x + MHSA(LN(x)); x shape (R, S, D); fused LN + QKV + attn + proj + residual.

    TODO(synk): for large S switch to a flash-style K/V-tiled online softmax so the
    full (S, S) score matrix never sits in VMEM (v7x has only 64 MiB); on v5e/v6e
    raise vmem_limit_bytes instead."""
    R, S, D = x.shape
    g, b = ln
    wqkv, bqkv, wo, bo = attn
    RB = min(rb_target, max(1, pl.cdiv(R, 2)))          # grid >= 2 when R > 1 (v7x megacore)
    Rp = _round_up(R, RB)
    xp = jnp.pad(x, ((0, Rp - R), (0, 0), (0, 0))) if Rp != R else x
    out = pl.pallas_call(
        functools.partial(_ln_mhsa_kernel, n_head=n_head),
        out_shape=jax.ShapeDtypeStruct((Rp, S, D), out_dtype),
        grid=(Rp // RB,),
        in_specs=[pl.BlockSpec((RB, S, D), lambda r: (r, 0, 0)),
                  pl.BlockSpec((1, D), lambda r: (0, 0)),
                  pl.BlockSpec((1, D), lambda r: (0, 0)),
                  pl.BlockSpec((D, 3 * D), lambda r: (0, 0)),
                  pl.BlockSpec((1, 3 * D), lambda r: (0, 0)),
                  pl.BlockSpec((D, D), lambda r: (0, 0)),
                  pl.BlockSpec((1, D), lambda r: (0, 0))],
        out_specs=pl.BlockSpec((RB, S, D), lambda r: (r, 0, 0)),
        compiler_params=_PARALLEL_1D,
    )(xp, g.reshape(1, D), b.reshape(1, D), wqkv, bqkv.reshape(1, 3 * D),
      wo, bo.reshape(1, D))
    return out[:R] if Rp != R else out


def _ln_mhsa_col_kernel(x_ref, g_ref, b_ref, wqkv_ref, bqkv_ref, wo_ref, bo_ref, o_ref,
                        *, n_head):
    # Column attention: the block is (1, L, CB, D); sequences run along axis 0.
    x = x_ref[0].astype(jnp.float32)                    # (L, CB, D)
    xn = _layernorm(x, g_ref[...], b_ref[...])
    xt = jnp.swapaxes(xn, 0, 1)                         # (CB, L, D) in-VMEM (no HBM pass)
    att = _attn_core(xt, wqkv_ref[...], bqkv_ref[...], wo_ref[...], bo_ref[...], n_head)
    o_ref[0] = (x + jnp.swapaxes(att, 0, 1)).astype(o_ref.dtype)


def ln_mhsa_col_residual(pair, ln, attn, n_head, cb_target=256, out_dtype=jnp.bfloat16):
    """Pair column attention on (B, L, L, D) without host transposes: the
    BlockSpec index_map hands the kernel (1, L, CB, D) column slabs and only the
    small tile is transposed in VMEM."""
    B, L, _, D = pair.shape
    g, b = ln
    wqkv, bqkv, wo, bo = attn
    CB = L if L <= 8 else min(cb_target, _round_up(pl.cdiv(L, 2), 8))
    Lp = _round_up(L, CB)
    xp = jnp.pad(pair, ((0, 0), (0, 0), (0, Lp - L), (0, 0))) if Lp != L else pair
    out = pl.pallas_call(
        functools.partial(_ln_mhsa_col_kernel, n_head=n_head),
        out_shape=jax.ShapeDtypeStruct((B, L, Lp, D), out_dtype),
        grid=(B, Lp // CB),
        in_specs=[pl.BlockSpec((1, L, CB, D), lambda bb, c: (bb, 0, c, 0)),
                  pl.BlockSpec((1, D), lambda bb, c: (0, 0)),
                  pl.BlockSpec((1, D), lambda bb, c: (0, 0)),
                  pl.BlockSpec((D, 3 * D), lambda bb, c: (0, 0)),
                  pl.BlockSpec((1, 3 * D), lambda bb, c: (0, 0)),
                  pl.BlockSpec((D, D), lambda bb, c: (0, 0)),
                  pl.BlockSpec((1, D), lambda bb, c: (0, 0))],
        out_specs=pl.BlockSpec((1, L, CB, D), lambda bb, c: (bb, 0, c, 0)),
        compiler_params=_parallel(2),
    )(xp, g.reshape(1, D), b.reshape(1, D), wqkv, bqkv.reshape(1, 3 * D),
      wo, bo.reshape(1, D))
    return out[:, :, :L] if Lp != L else out


def _opm_kernel(mi_ref, mj_ref, wl_ref, bl_ref, wr_ref, br_ref, wo_ref, bo_ref,
                res_ref, o_ref, *, inv_n):
    mi = mi_ref[0]                                      # (N, TI, dm) bf16
    mj = mj_ref[0]                                      # (N, TJ, dm) bf16
    N, TI, dm = mi.shape
    TJ = mj.shape[1]
    Dp = wo_ref.shape[1]
    a = jnp.dot(mi.reshape(N * TI, dm), wl_ref[...],
                preferred_element_type=jnp.float32) + bl_ref[...]    # (N*TI, 8)
    b = jnp.dot(mj.reshape(N * TJ, dm), wr_ref[...],
                preferred_element_type=jnp.float32) + br_ref[...]    # (N*TJ, 8)
    # Contract over the MSA depth with bf16 MXU operands, f32 accumulation.
    op = lax.dot_general(a.reshape(N, TI * 8).astype(jnp.bfloat16),
                         b.reshape(N, TJ * 8).astype(jnp.bfloat16),
                         (((0,), (0,)), ((), ())),
                         preferred_element_type=jnp.float32) * inv_n  # (TI*8, TJ*8)
    op = op.reshape(TI, 8, TJ, 8).transpose(0, 2, 1, 3).reshape(TI * TJ, 64)
    out = (res_ref[0].reshape(TI * TJ, Dp).astype(jnp.float32)
           + jnp.dot(op.astype(jnp.bfloat16), wo_ref[...],
                     preferred_element_type=jnp.float32) + bo_ref[...])
    o_ref[0] = out.reshape(TI, TJ, Dp).astype(o_ref.dtype)


def opm_pair_update(msa, pair, opm_left, opm_right, opm_out, out_dtype=jnp.bfloat16):
    """pair += OPM(msa) @ W_out, fully fused in one kernel: left/right 8-wide
    projections, the outer-product-mean over the MSA depth (/N fused), the
    64->d_pair output projection and the pair residual; lane-dense d_pair store."""
    B, N, L, dm = msa.shape
    Dp = pair.shape[-1]
    wl, bl = opm_left
    wr, br = opm_right
    wo, bo = opm_out
    T = L if L <= 128 else 128   # TODO(synk): shrink to <=64 on v7x at very large L (64 MiB VMEM)
    Lp = _round_up(L, T)
    if Lp != L:
        msa = jnp.pad(msa, ((0, 0), (0, 0), (0, Lp - L), (0, 0)))
        pair = jnp.pad(pair, ((0, 0), (0, Lp - L), (0, Lp - L), (0, 0)))
    nt = Lp // T
    out = pl.pallas_call(
        functools.partial(_opm_kernel, inv_n=1.0 / float(N)),
        out_shape=jax.ShapeDtypeStruct((B, Lp, Lp, Dp), out_dtype),
        grid=(B, nt, nt),
        in_specs=[pl.BlockSpec((1, N, T, dm), lambda b, i, j: (b, 0, i, 0)),
                  pl.BlockSpec((1, N, T, dm), lambda b, i, j: (b, 0, j, 0)),
                  pl.BlockSpec((dm, 8), lambda b, i, j: (0, 0)),
                  pl.BlockSpec((1, 8), lambda b, i, j: (0, 0)),
                  pl.BlockSpec((dm, 8), lambda b, i, j: (0, 0)),
                  pl.BlockSpec((1, 8), lambda b, i, j: (0, 0)),
                  pl.BlockSpec((64, Dp), lambda b, i, j: (0, 0)),
                  pl.BlockSpec((1, Dp), lambda b, i, j: (0, 0)),
                  pl.BlockSpec((1, T, T, Dp), lambda b, i, j: (b, i, j, 0))],
        out_specs=pl.BlockSpec((1, T, T, Dp), lambda b, i, j: (b, i, j, 0)),
        compiler_params=_parallel(3),
    )(msa, msa, wl, bl.reshape(1, 8), wr, br.reshape(1, 8),
      wo, bo.reshape(1, Dp), pair)
    if Lp != L:
        out = out[:, :L, :L]
    return out


def _c6d_kernel(p_ref, pt_ref, ws_ref, bs_ref, wa_ref, ba_ref, logit_ref, prob_ref):
    T = p_ref.shape[1]
    Dp = p_ref.shape[3]
    p = p_ref[0].astype(jnp.float32)                         # pair[b, i, j, :]
    pt = jnp.swapaxes(pt_ref[0], 0, 1).astype(jnp.float32)   # pair[b, j, i, :] (tile read via index_map)
    p2 = p.reshape(T * T, Dp)
    psum = (p + pt).reshape(T * T, Dp)
    # symm(x) + symm(x^T) = W(p + p^T) + 2b ; weights zero-padded to 128 lanes.
    sym = jnp.dot(psum.astype(jnp.bfloat16), ws_ref[...],
                  preferred_element_type=jnp.float32) + 2.0 * bs_ref[...]
    asym = jnp.dot(p2.astype(jnp.bfloat16), wa_ref[...],
                   preferred_element_type=jnp.float32) + ba_ref[...]

    def _sm(z):
        z = z - jnp.max(z, axis=-1, keepdims=True)
        e = jnp.exp(z)
        return e * pl.reciprocal(jnp.sum(e, axis=-1, keepdims=True), approx=True)

    # dist(37) | omega(37) | theta(37) | phi(19) -> single 130-wide stores.
    logit_ref[0] = jnp.concatenate([sym[:, :74], asym[:, :56]],
                                   axis=-1).reshape(T, T, 130)
    prob_ref[0] = jnp.concatenate(
        [_sm(sym[:, :37]), _sm(sym[:, 37:74]), _sm(asym[:, :37]), _sm(asym[:, 37:56])],
        axis=-1).reshape(T, T, 130)


def c6d_and_probs(pair, P):
    """Fused DistanceNetwork heads + symmetrization + per-head softmaxes.
    The transposed pair tile is read straight from HBM via the index_map."""
    B, L, _, Dp = pair.shape
    ws, bs = P['proj_symm']
    wa, ba = P['proj_asymm']
    T = L if L <= 128 else 128
    Lp = _round_up(L, T)
    if Lp != L:
        pair = jnp.pad(pair, ((0, 0), (0, Lp - L), (0, Lp - L), (0, 0)))
    nt = Lp // T
    logits_cat, prob = pl.pallas_call(
        _c6d_kernel,
        out_shape=(jax.ShapeDtypeStruct((B, Lp, Lp, 130), jnp.float32),
                   jax.ShapeDtypeStruct((B, Lp, Lp, 130), jnp.float32)),
        grid=(B, nt, nt),
        in_specs=[pl.BlockSpec((1, T, T, Dp), lambda b, i, j: (b, i, j, 0)),
                  pl.BlockSpec((1, T, T, Dp), lambda b, i, j: (b, j, i, 0)),
                  pl.BlockSpec((Dp, 128), lambda b, i, j: (0, 0)),
                  pl.BlockSpec((1, 128), lambda b, i, j: (0, 0)),
                  pl.BlockSpec((Dp, 128), lambda b, i, j: (0, 0)),
                  pl.BlockSpec((1, 128), lambda b, i, j: (0, 0))],
        out_specs=(pl.BlockSpec((1, T, T, 130), lambda b, i, j: (b, i, j, 0)),
                   pl.BlockSpec((1, T, T, 130), lambda b, i, j: (b, i, j, 0))),
        compiler_params=_parallel(3),
    )(pair, pair, ws, bs.reshape(1, 128), wa, ba.reshape(1, 128))
    if Lp != L:
        logits_cat = logits_cat[:, :L, :L]
        prob = prob[:, :L, :L]
    ld = logits_cat[..., :37]
    lo = logits_cat[..., 37:74]
    lt = logits_cat[..., 74:111]
    lphi = logits_cat[..., 111:130]
    logits = tuple(x.transpose(0, 3, 1, 2) for x in (ld, lo, lt, lphi))   # NCHW like torch
    return logits, prob


# ------------------------------ parameters ---------------------------------

def ln_params(d):
    return jnp.ones((d,), jnp.float32), jnp.zeros((d,), jnp.float32)


def lin_params(key, d_in, d_out):
    w = jax.random.normal(key, (d_in, d_out), jnp.float32) / np.sqrt(d_in)
    return w.astype(jnp.bfloat16), jnp.zeros((d_out,), jnp.float32)


def padded_lin_params(key, d_in, d_out, d_pad):
    """Head weights zero-padded to a lane-dense `d_pad`-wide output."""
    w, b = lin_params(key, d_in, d_out)
    return jnp.pad(w, ((0, 0), (0, d_pad - d_out))), jnp.pad(b, (0, d_pad - d_out))


def attn_params(key, d):
    ks = jax.random.split(key, 4)

    def w(k):
        return jax.random.normal(k, (d, d), jnp.float32) / np.sqrt(d)

    wqkv = jnp.concatenate([w(ks[0]), w(ks[1]), w(ks[2])], axis=1).astype(jnp.bfloat16)
    wo = w(ks[3]).astype(jnp.bfloat16)
    return (wqkv, jnp.zeros((3 * d,), jnp.float32), wo, jnp.zeros((d,), jnp.float32))


def build_params(key, cfg):
    d_msa, d_pair, r_ff = cfg['d_msa'], cfg['d_pair'], cfg['r_ff']
    keys = iter(jax.random.split(key, 128))
    P = {}
    # MSA_emb (Embedding(21, d_msa) + positional encoding) — gather table.
    P['msa_emb'] = jax.random.normal(next(keys), (21, d_msa), jnp.float32) * 0.1
    # Pair_emb_wo_templ: token table, left/right projection (fused), relpos table.
    P['pair_tok_emb'] = jax.random.normal(next(keys), (21, d_pair // 2), jnp.float32) * 0.1
    P['pair_lr'] = lin_params(next(keys), d_pair // 2, 2 * d_pair)
    P['relpos_w'] = jax.random.normal(next(keys), (65, d_pair), jnp.float32) * 0.1
    P['relpos_b'] = jnp.zeros((d_pair,), jnp.float32)
    # IterativeFeatureExtractor trunk.
    blocks = []
    for _ in range(cfg['n_module']):
        blk = {}
        blk['msa_ln'] = ln_params(d_msa)
        blk['msa_attn'] = attn_params(next(keys), d_msa)
        blk['msa_ff_ln'] = ln_params(d_msa)
        blk['msa_ff1'] = lin_params(next(keys), d_msa, d_msa * r_ff)
        blk['msa_ff2'] = lin_params(next(keys), d_msa * r_ff, d_msa)
        blk['opm_left'] = lin_params(next(keys), d_msa, 8)
        blk['opm_right'] = lin_params(next(keys), d_msa, 8)
        blk['opm_out'] = lin_params(next(keys), 64, d_pair)
        blk['pair_ln_row'] = ln_params(d_pair)
        blk['pair_attn_row'] = attn_params(next(keys), d_pair)
        blk['pair_ln_col'] = ln_params(d_pair)
        blk['pair_attn_col'] = attn_params(next(keys), d_pair)
        blk['pair_ff_ln'] = ln_params(d_pair)
        blk['pair_ff1'] = lin_params(next(keys), d_pair, d_pair * r_ff)
        blk['pair_ff2'] = lin_params(next(keys), d_pair * r_ff, d_pair)
        blocks.append(blk)
    P['blocks'] = blocks
    # Structure head (stand-in for the SE3 structure module): 9 xyz + 1 lddt fused.
    P['str_head'] = lin_params(next(keys), d_msa, 10)
    # DistanceNetwork: 37 dist + 37 omega (symm), 37 theta + 19 phi (asymm); padded to 128.
    P['proj_symm'] = padded_lin_params(next(keys), d_pair, 74, 128)
    P['proj_asymm'] = padded_lin_params(next(keys), d_pair, 56, 128)
    # Refine_module (d_pair = 130 = 37+37+37+19).
    P['ref_node_in'] = lin_params(next(keys), d_msa + 21, d_msa)
    P['ref_pair_pool'] = lin_params(next(keys), 130, d_msa)
    ref_blocks = []
    for _ in range(cfg['n_module_ref']):
        rb = {}
        rb['ln'] = ln_params(d_msa)
        rb['attn'] = attn_params(next(keys), d_msa)
        rb['ff_ln'] = ln_params(d_msa)
        rb['ff1'] = lin_params(next(keys), d_msa, d_msa * r_ff)
        rb['ff2'] = lin_params(next(keys), d_msa * r_ff, d_msa)
        ref_blocks.append(rb)
    P['ref_blocks'] = ref_blocks
    P['ref_head'] = lin_params(next(keys), d_msa, 10)
    return P


# ------------------------------ model pieces -------------------------------

def sinusoid_pos(idx, d):
    pos = idx.astype(jnp.float32)[..., None]
    i = jnp.arange(d // 2, dtype=jnp.float32)
    div = jnp.exp(-jnp.log(10000.0) * (2.0 * i) / d)
    ang = pos * div
    return jnp.concatenate([jnp.sin(ang), jnp.cos(ang)], axis=-1)


def msa_emb_forward(P, msa_tok, idx, d_msa):
    emb = jnp.take(P['msa_emb'], msa_tok, axis=0)                  # gather, no 1-hot matmul
    return (emb + sinusoid_pos(idx, d_msa)[:, None, :, :]).astype(jnp.bfloat16)


def pair_emb_forward(P, seq, idx, d_pair):
    tok = jnp.take(P['pair_tok_emb'], seq, axis=0)                 # (B, L, d_pair//2)
    uv = linear(tok, *P['pair_lr'])                                # (B, L, 2*d_pair)
    u, v = uv[..., :d_pair], uv[..., d_pair:]
    relpos = jnp.clip(idx[:, :, None] - idx[:, None, :], -32, 32) + 32
    rp = jnp.take(P['relpos_w'], relpos, axis=0) + P['relpos_b']   # gather relpos table
    # cat(left,right) @ Wproj == tok_i @ W_left + tok_j @ W_right, built by broadcast add.
    return (u[:, :, None, :] + v[:, None, :, :] + rp).astype(jnp.bfloat16)


def feat_extractor_forward(P, msa, pair, seq1hot, idx, cfg):
    # TODO(synk): the reference trunk also consumes seq1hot inside the SE3 structure
    # module, which has no clean Pallas equivalent; it is unused here.
    B, N, L, d_msa = msa.shape
    d_pair = pair.shape[-1]
    for blk in P['blocks']:
        # MSA row self-attention (fused LN + QKV + heads-batched attention + proj + residual).
        msa = ln_mhsa_residual(msa.reshape(B * N, L, d_msa), blk['msa_ln'],
                               blk['msa_attn'], cfg['n_head_msa']).reshape(B, N, L, d_msa)
        # MSA feed-forward (fused LN + FF1 + ReLU + FF2 + residual).
        msa = ln_ffn_residual(msa, blk['msa_ff_ln'], blk['msa_ff1'], blk['msa_ff2'])
        # MSA -> pair outer-product-mean, fully fused with the output projection + residual.
        pair = opm_pair_update(msa, pair, blk['opm_left'], blk['opm_right'], blk['opm_out'])
        # Pair row attention.
        pair = ln_mhsa_residual(pair.reshape(B * L, L, d_pair), blk['pair_ln_row'],
                                blk['pair_attn_row'], cfg['n_head_pair']
                                ).reshape(B, L, L, d_pair)
        # Pair column attention: column slabs via BlockSpec, no host transpose round-trip.
        pair = ln_mhsa_col_residual(pair, blk['pair_ln_col'], blk['pair_attn_col'],
                                    cfg['n_head_pair'])
        # Pair feed-forward.
        pair = ln_ffn_residual(pair, blk['pair_ff_ln'], blk['pair_ff1'], blk['pair_ff2'])
    # TODO(synk): SE3-equivariant structure module has no clean Pallas equivalent;
    # xyz/lddt are one fused linear head on the query-sequence features instead.
    msa_q = msa[:, 0]                                              # (B, L, d_msa) bf16
    head = linear(msa_q, *P['str_head'])                           # (B, L, 10)
    xyz = head[..., :9].reshape(B, L, 3, 3)
    lddt = jax.nn.sigmoid(head[..., 9:10])                         # (B, L, 1)
    return msa_q, pair, xyz, lddt


def refine_forward(P, msa_q, prob_s, seq1hot, idx, cfg):
    B, L, d_msa = msa_q.shape
    node = linear(jnp.concatenate([msa_q.astype(jnp.float32), seq1hot], axis=-1),
                  *P['ref_node_in'])
    node = node + sinusoid_pos(idx, d_msa)
    node = linear_residual(jnp.mean(prob_s, axis=2), *P['ref_pair_pool'], res=node,
                           out_dtype=jnp.bfloat16)
    for rb in P['ref_blocks']:
        node = ln_mhsa_residual(node, rb['ln'], rb['attn'], cfg['n_head_msa'])
        node = ln_ffn_residual(node, rb['ff_ln'], rb['ff1'], rb['ff2'])
    # TODO(synk): SE3-equivariant refinement transformer not expressible; fused linear head.
    head = linear(node, *P['ref_head'])                            # (B, L, 10)
    ref_xyz = head[..., :9].reshape(B, L, 3, 3)
    ref_lddt = jax.nn.sigmoid(head[..., 9:10])                     # (B, L, 1)
    return ref_xyz, ref_lddt


def rosettafold_e2e_forward(P, msa, seq, idx, cfg,
                            return_raw=False, refine_only=False, prob_s=None):
    seq1hot = jax.nn.one_hot(seq, 21, dtype=jnp.float32)
    logits = None
    xyz = lddt = pair_out = None
    if not refine_only:
        msa_feat = msa_emb_forward(P, msa, idx, cfg['d_msa'])
        pair = pair_emb_forward(P, seq, idx, cfg['d_pair'])
        msa_q, pair, xyz, lddt = feat_extractor_forward(P, msa_feat, pair, seq1hot, idx, cfg)
        logits, prob_s = c6d_and_probs(pair, P)
        pair_out = pair.astype(jnp.float32)
        msa_out = msa_q.astype(jnp.float32)
    else:
        msa_q = msa                                                # already (B, L, d_msa) features
        msa_out = msa
    B, L = msa_q.shape[:2]
    # return_raw only meaningful when the trunk ran (avoids the undefined-logits path).
    if return_raw and not refine_only:
        return logits, msa_out, xyz, lddt.reshape(B, L), pair_out
    ref_xyz, ref_lddt = refine_forward(P, msa_q, prob_s, seq1hot, idx, cfg)
    if refine_only:
        return ref_xyz, ref_lddt.reshape(B, L)
    return logits, msa_out, ref_xyz, ref_lddt.reshape(B, L), pair_out


# ---------------------------------- main ------------------------------------

if __name__ == "__main__":
    cfg = dict(n_module=2, n_module_ref=2, d_msa=64, d_pair=128,
               n_head_msa=4, n_head_pair=8, r_ff=4)
    key = jax.random.PRNGKey(0)
    kp, km = jax.random.split(key)
    P = build_params(kp, cfg)

    B, N, L = 1, 4, 8
    msa = jax.random.randint(km, (B, N, L), 0, 21, dtype=jnp.int32)
    seq = msa[:, 0, :]
    idx = jnp.broadcast_to(jnp.arange(L, dtype=jnp.int32), (B, L))

    out = rosettafold_e2e_forward(P, msa, seq, idx, cfg)
    out = jax.block_until_ready(out)

    logits, msa_q, ref_xyz, ref_lddt, pair = out
    assert logits[0].shape == (B, 37, L, L) and logits[1].shape == (B, 37, L, L)
    assert logits[2].shape == (B, 37, L, L) and logits[3].shape == (B, 19, L, L)
    assert msa_q.shape == (B, L, cfg['d_msa'])
    assert ref_xyz.shape == (B, L, 3, 3)
    assert ref_lddt.shape == (B, L)
    assert pair.shape == (B, L, L, cfg['d_pair'])
    assert all(bool(jnp.all(jnp.isfinite(x))) for x in (msa_q, ref_xyz, ref_lddt, pair))
    print("KERNEL_OK")
</pallas_src>

<mosaic_0001>
module attributes {stable_mosaic.version = 11 : i64} {
  func.func @_linear_kernel(%arg0: i32, %arg1: memref<8x64xf32, #tpu.memory_space<vmem>>, %arg2: memref<64x256xbf16, #tpu.memory_space<vmem>>, %arg3: memref<1x256xf32, #tpu.memory_space<vmem>>, %arg4: memref<8x256xf32, #tpu.memory_space<vmem>>) attributes {dimension_semantics = [#tpu.dimension_semantics<parallel>], iteration_bounds = array<i64: 1>, scalar_prefetch = 0 : i64, scratch_operands = 0 : i64, tpu.core_type = #tpu.core_type<tc>, window_params = [{transform_indices = @transform_0, window_bounds = array<i64: 8, 64>}, {pipeline_mode = #tpu.pipeline_mode<synchronous>, transform_indices = @transform_1, window_bounds = array<i64: 64, 256>}, {pipeline_mode = #tpu.pipeline_mode<synchronous>, transform_indices = @transform_2, window_bounds = array<i64: 1, 256>}, {transform_indices = @transform_3, window_bounds = array<i64: 8, 256>}]} {
    %c0 = arith.constant 0 : index
    %c0_0 = arith.constant 0 : index
    %0 = vector.load %arg1[%c0, %c0_0] : memref<8x64xf32, #tpu.memory_space<vmem>>, vector<8x64xf32>
    %1 = arith.truncf %0 : vector<8x64xf32> to vector<8x64xbf16>
    %c0_1 = arith.constant 0 : index
    %c0_2 = arith.constant 0 : index
    %2 = vector.load %arg2[%c0_1, %c0_2] : memref<64x256xbf16, #tpu.memory_space<vmem>>, vector<64x256xbf16>
    %cst = arith.constant dense<0.000000e+00> : vector<8x256xf32>
    %3 = tpu.matmul %1, %2, %cst {dimension_numbers = #tpu.dot_dimension_numbers<[1], [0], [0], [1], [0, 0, 1, 1], [], []>} : vector<8x64xbf16>, vector<64x256xbf16>, vector<8x256xf32> -> vector<8x256xf32>
    %c0_3 = arith.constant 0 : index
    %c0_4 = arith.constant 0 : index
    %4 = vector.load %arg3[%c0_3, %c0_4] : memref<1x256xf32, #tpu.memory_space<vmem>>, vector<1x256xf32>
    %5 = vector.broadcast %4 : vector<1x256xf32> to vector<8x256xf32>
    %6 = arith.addf %3, %5 : vector<8x256xf32>
    %c0_5 = arith.constant 0 : index
    %c0_6 = arith.constant 0 : index
    %7 = vector.load %arg4[%c0_5, %c0_6] : memref<8x256xf32, #tpu.memory_space<vmem>>, vector<8x256xf32>
    tpu.vector_store %arg4[%c0_5, %c0_6], %6 {strides = array<i32>} : memref<8x256xf32, #tpu.memory_space<vmem>>, vector<8x256xf32>,
    return
  }
  func.func @transform_0(%arg0: i32) -> (i32, i32) {
    %c0_i32 = arith.constant 0 : i32
    %c0_i32_0 = arith.constant 0 : i32
    return %arg0, %c0_i32 : i32, i32
  }
  func.func @transform_1(%arg0: i32) -> (i32, i32) {
    %c0_i32 = arith.constant 0 : i32
    %c0_i32_0 = arith.constant 0 : i32
    %c0_i32_1 = arith.constant 0 : i32
    return %c0_i32, %c0_i32_0 : i32, i32
  }
  func.func @transform_2(%arg0: i32) -> (i32, i32) {
    %c0_i32 = arith.constant 0 : i32
    %c0_i32_0 = arith.constant 0 : i32
    %c0_i32_1 = arith.constant 0 : i32
    return %c0_i32, %c0_i32_0 : i32, i32
  }
  func.func @transform_3(%arg0: i32) -> (i32, i32) {
    %c0_i32 = arith.constant 0 : i32
    %c0_i32_0 = arith.constant 0 : i32
    return %arg0, %c0_i32 : i32, i32
  }
}

</mosaic_0001>

<llo_original>
// kernel: tpu_custom_call.1
$region0: #{tpu_custom_call.1}
  #allocation0 [shape = 'u32[]', space=smem, size = 0x4, offset = 0x4, fixed_abs, tag = 'smem constant byte address 0x4 - core index']
  #allocation1 [shape = 'u32[72,128]{1,0:T(1,128)}', space=vmem, size = 0x9000, scoped, tag = 'internal scratch']
  %s0 = inlined_call_operand.hbm [shape: f32[8,64], index: 0, kind: input, shape index: {}]
  %s1 = inlined_call_operand.hbm [shape: bf16[64,256], index: 1, kind: input, shape index: {}]
  %s2 = inlined_call_operand.hbm [shape: f32[1,256], index: 2, kind: input, shape index: {}]
  %s3 = inlined_call_operand.hbm [shape: f32[8,256], index: 3, kind: output, shape index: {}]
  %s4 = sld [smem:[#allocation0]]
  $region34: #{tpu_custom_call.1} parent=0
    _
  %s6 = ssub.s32 1, %s4
  %s7 = scalar_select 0, %s6, %s4
  $region1: #{tpu_custom_call.1} parent=0
    #allocation2 [shape = 'u8[4096]{0}', space=vmem, size = 0x1000, scoped, tag = 'input window, operand 0, single buffered']
    #allocation3 [shape = 's32[1]{0}', space=sflag, size = 0x4, scoped, tag = 'scoped memory for tpu_custom_call.1']
    #allocation4 [shape = 's32[1]{0}', space=sflag, size = 0x4, scoped, tag = 'scoped memory for tpu_custom_call.1']
    #allocation5 [shape = 'u8[32768]{0}', space=vmem, size = 0x8000, scoped, tag = 'input window, operand 1, single buffered']
    #allocation6 [shape = 's32[1]{0}', space=sflag, size = 0x4, scoped, tag = 'scoped memory for tpu_custom_call.1']
    #allocation7 [shape = 'u8[1024]{0}', space=vmem, size = 0x400, scoped, tag = 'input window, operand 2, single buffered']
    #allocation8 [shape = 'u8[8192]{0}', space=vmem, size = 0x2000, scoped, tag = 'output window, operand 0, single buffered']
    %8 = vsyncpa [#allocation3], 0
    %9 = vsyncpa [#allocation6], 0
    %10 = vsyncpa [#allocation4], 0
    // Predicated region
    $region2: #{tpu_custom_call.1} parent=1 // pred_check
      _
    $region3: #{tpu_custom_call.1} parent=1 // pred_check_branch
      %12 = sbr.rel (0) target = $region5
    $region4: #{tpu_custom_call.1} parent=1 // pred_region
      %14 = vsyncadd [#allocation3], 0
      %s16 = sshll.u32 %s0, 4
      %s17 = int_to_ptr.hbm [resolvable:$true] %s16
      %s18 = sshll.u32 [#allocation2], 4
      %s19 = int_to_ptr.vmem [resolvable:$true] %s18
      %21 = dma.hbm_to_vmem [thread:$0]  %s17, 128, %s19, [#allocation3]
    $region5: #{tpu_custom_call.1} parent=1 // pred_fallthru
      _
    // Predicated region
    $region6: #{tpu_custom_call.1} parent=1 // pred_check
      _
    $region7: #{tpu_custom_call.1} parent=1 // pred_check_branch
      %23 = sbr.rel (0) target = $region9
    $region8: #{tpu_custom_call.1} parent=1 // pred_region
      %25 = vsyncadd [#allocation6], 0
      %s26 = sshll.u32 %s1, 4
      %s27 = int_to_ptr.hbm [resolvable:$true] %s26
      %s28 = sshll.u32 [#allocation5], 4
      %s29 = int_to_ptr.vmem [resolvable:$true] %s28
      %34 = dma.hbm_to_vmem [thread:$0]  %s27, 1024, %s29, [#allocation6], 128, 128, 8
    $region9: #{tpu_custom_call.1} parent=1 // pred_fallthru
      _
    // Predicated region
    $region10: #{tpu_custom_call.1} parent=1 // pred_check
      _
    $region11: #{tpu_custom_call.1} parent=1 // pred_check_branch
      %36 = sbr.rel (0) target = $region13
    $region12: #{tpu_custom_call.1} parent=1 // pred_region
      %38 = vsyncadd [#allocation6], 0
      %s40 = sshll.u32 %s2, 4
      %s41 = int_to_ptr.hbm [resolvable:$true] %s40
      %s42 = sshll.u32 [#allocation7], 4
      %s43 = int_to_ptr.vmem [resolvable:$true] %s42
      %45 = dma.hbm_to_vmem [thread:$0]  %s41, 32, %s43, [#allocation6]
    $region13: #{tpu_custom_call.1} parent=1 // pred_fallthru
      _
    // Predicated region
    $region14: #{tpu_custom_call.1} parent=1 // pred_check
      _
    $region15: #{tpu_custom_call.1} parent=1 // pred_check_branch
      %47 = sbr.rel (0) target = $region17
    $region16: #{tpu_custom_call.1} parent=1 // pred_region
      %49 = dma.done [#allocation3], 128
    $region17: #{tpu_custom_call.1} parent=1 // pred_fallthru
      _
    // Predicated region
    $region18: #{tpu_custom_call.1} parent=1 // pred_check
      _
    $region19: #{tpu_custom_call.1} parent=1 // pred_check_branch
      %51 = sbr.rel (0) target = $region21
    $region20: #{tpu_custom_call.1} parent=1 // pred_region
      %53 = dma.done [#allocation6], 1024
    $region21: #{tpu_custom_call.1} parent=1 // pred_fallthru
      _
    // Predicated region
    $region22: #{tpu_custom_call.1} parent=1 // pred_check
      _
    $region23: #{tpu_custom_call.1} parent=1 // pred_check_branch
      %55 = sbr.rel (0) target = $region25
    $region24: #{tpu_custom_call.1} parent=1 // pred_region
      %57 = dma.done [#allocation6], 32
    $region25: #{tpu_custom_call.1} parent=1 // pred_fallthru
      _
    %v59 = vld [vmem:[#allocation2] sm:$0xff]
    %v60 = vpack.c.bf16 %v59, %v59
    %v61 = vld [vmem:[#allocation5] sm:$0xff]
    %v62 = vld [vmem:[#allocation5 + $0x8] sm:$0xff]
    %v63 = vld [vmem:[#allocation5 + $0x10] sm:$0xff]
    %v64 = vld [vmem:[#allocation5 + $0x18] sm:$0xff]
    %v65 = vld [vmem:[#allocation5 + $0x20] sm:$0xff]
    %v66 = vld [vmem:[#allocation5 + $0x28] sm:$0xff]
    %v67 = vld [vmem:[#allocation5 + $0x30] sm:$0xff]
    %v68 = vld [vmem:[#allocation5 + $0x38] sm:$0xff]
    %v69 = vld [vmem:[#allocation7] sm:$0x3]
    %v71 = vperm.slane %v69, 0
    %v72 = vperm.slane %v69, 1
    %v83 = vunpack.c.l.b16 %v61
    %v84 = vunpack.c.h.b16 %v61
    %v85 = vunpack.c.l.b16 %v62
    %v86 = vunpack.c.h.b16 %v62
    %v87 = vunpack.c.l.b16 %v63
    %v88 = vunpack.c.h.b16 %v63
    %v89 = vunpack.c.l.b16 %v64
    %v90 = vunpack.c.h.b16 %v64
    %v91 = vunpack.c.l.b16 %v65
    %v92 = vunpack.c.h.b16 %v65
    %v93 = vunpack.c.l.b16 %v66
    %v94 = vunpack.c.h.b16 %v66
    %v95 = vunpack.c.l.b16 %v67
    %v96 = vunpack.c.h.b16 %v67
    %v97 = vunpack.c.l.b16 %v68
    %v98 = vunpack.c.h.b16 %v68
    %v99 = vpack.c.b16 %v85, %v83
    %v100 = vpack.c.b16 %v86, %v84
    %v101 = vpack.c.b16 %v89, %v87
    %v102 = vpack.c.b16 %v90, %v88
    %v103 = vpack.c.b16 %v93, %v91
    %v104 = vpack.c.b16 %v94, %v92
    %v105 = vpack.c.b16 %v97, %v95
    %v106 = vpack.c.b16 %v98, %v96
    %vm115 = vcmask 523264
    %v117 = vsel %vm115, %v60, 0
    %119 = vmatpush.bf16.msra.mxu0 0
    %120 = vmatpush.bf16.msra.mxu0 0
    %121 = vmatpush.bf16.msra.mxu0 0
    %122 = vmatpush.bf16.msra.mxu0 0
    %123 = vmatpush.bf16.msra.mxu0 %v105
    %124 = vmatpush.bf16.msra.mxu0 %v103
    %125 = vmatpush.bf16.msra.mxu0 %v101
    %126 = vmatpush.bf16.msra.mxu0 %v99
    %127 = vmatmul.bf16.gmra.mxu0 %v117
    %v128 = vpop.f32.mrf.mxu0
    %v129 = vadd.f32 %v71, %v128
    %v130 = vpop.f32.mrf.mxu0
    %131 = vdwg.mxu0
    %132 = vmatpush.bf16.msra.mxu0 0
    %133 = vmatpush.bf16.msra.mxu0 0
    %134 = vmatpush.bf16.msra.mxu0 0
    %135 = vmatpush.bf16.msra.mxu0 0
    %136 = vmatpush.bf16.msra.mxu0 %v106
    %137 = vmatpush.bf16.msra.mxu0 %v104
    %138 = vmatpush.bf16.msra.mxu0 %v102
    %139 = vmatpush.bf16.msra.mxu0 %v100
    %140 = vmatmul.bf16.gmra.mxu0 %v117
    %v141 = vpop.f32.mrf.mxu0
    %v142 = vadd.f32 %v72, %v141
    %v143 = vpop.f32.mrf.mxu0
    %144 = vdwg.mxu0
    %145 = vst [vmem:[#allocation8] sm:$0xff] %v129
    %146 = vst [vmem:[#allocation8 + $0x8] sm:$0xff] %v142
    // Predicated region
    $region26: #{tpu_custom_call.1} parent=1 // pred_check
      _
    $region27: #{tpu_custom_call.1} parent=1 // pred_check_branch
      %148 = sbr.rel (0) target = $region29
    $region28: #{tpu_custom_call.1} parent=1 // pred_region
      %150 = vsyncadd [#allocation4], 0
      %s152 = sshll.u32 [#allocation8], 4
      %s153 = int_to_ptr.vmem [resolvable:$true] %s152
      %s154 = sshll.u32 %s3, 4
      %s155 = int_to_ptr.hbm [resolvable:$true] %s154
      %157 = dma.vmem_to_hbm [thread:$0]  %s153, 256, %s155, [#allocation4]
    $region29: #{tpu_custom_call.1} parent=1 // pred_fallthru
      _
    // Predicated region
    $region30: #{tpu_custom_call.1} parent=1 // pred_check
      _
    $region31: #{tpu_custom_call.1} parent=1 // pred_check_branch
      %159 = sbr.rel (0) target = $region33
    $region32: #{tpu_custom_call.1} parent=1 // pred_region
      %161 = dma.done [#allocation4], 256
    $region33: #{tpu_custom_call.1} parent=1 // pred_fallthru
      _
    %162 = vsyncpa [#allocation3], 1
    %163 = vsyncpa [#allocation6], 1
    %164 = vsyncpa [#allocation4], 1

</llo_original>
